<compile_context>
chip_gen: v5e
topology: v5e:2x2
jax: 0.10.0
libtpu: 0.0.40
codegen_flags: <defaults>
</compile_context>

<pallas_src>
import functools

import jax
import jax.numpy as jnp
from jax.experimental import pallas as pl
from jax.experimental.pallas import tpu as pltpu

KSIZE = 3
PAD = KSIZE // 2
C_IN = 1
C_OUT = 3


def _conv3x3_kernel(w_ref, b_ref, x_ref, o_ref, *, H, W):
    # w_ref : SMEM (C_OUT*C_IN*KSIZE*KSIZE,) flattened OIHW conv weights
    # b_ref : SMEM (C_OUT,)                  bias
    # x_ref : VMEM (NB, 1, H*W)              lane-dense input chunk
    # o_ref : VMEM (NB, C_OUT, H*W)          lane-dense output chunk
    NB = x_ref.shape[0]
    HW = H * W
    x = x_ref[:, 0, :]  # (NB, HW), single full-lane load

    # Flat-position iota for border masks.  Row masks need no div/mod;
    # column index uses a bitwise AND when W is a power of two (demo: W=16).
    p = jax.lax.broadcasted_iota(jnp.int32, (NB, HW), 1)
    if (W & (W - 1)) == 0:
        col = jnp.bitwise_and(p, W - 1)
    else:
        col = jax.lax.rem(p, W)
    row_ok = {-1: p >= W, 0: None, 1: p < (H - 1) * W}
    col_ok = {-1: col >= 1, 0: None, 1: col < (W - 1)}

    # Bias folded into accumulator initialization (review: no epilogue adds).
    accs = [jnp.full((NB, HW), b_ref[co], dtype=jnp.float32)
            for co in range(C_OUT)]

    # kh/kw outer, co inner: each shifted tap is materialized once (roll on
    # the XLU + select on the VPU) and reused for the 3 per-channel FMAs.
    # Tap (kh, kw) needs x[i+dy, j+dx] with dy=kh-1, dx=kw-1, which in the
    # flat layout is x_flat[p + dy*W + dx], masked to zero at the borders.
    for kh in range(KSIZE):
        dy = kh - PAD
        for kw in range(KSIZE):
            dx = kw - PAD
            delta = dy * W + dx
            if delta == 0:
                win = x
            else:
                win = pltpu.roll(x, (-delta) % HW, 1)  # win[p] = x[(p+delta) % HW]
            mask = None
            for m in (row_ok[dy], col_ok[dx]):
                if m is not None:
                    mask = m if mask is None else (mask & m)
            if mask is not None:
                win = jnp.where(mask, win, 0.0)
            for co in range(C_OUT):
                w_s = w_ref[(co * KSIZE + kh) * KSIZE + kw]  # C_IN == 1
                accs[co] = accs[co] + win * w_s

    # Lane-dense stores: minor dim is H*W (256 here -> unmasked vst).
    for co in range(C_OUT):
        o_ref[:, co, :] = accs[co]


def _batch_block(n, hw):
    # Register pressure: 3 live f32 accumulators per image -> cap NB at 4.
    # VMEM: keep double-buffered (in + out) blocks (sublane-padded) under
    # ~8 MiB, well below the scoped limit on v5e/v6e/v7x.
    # v7x: keep grid >= 2 whenever N > 1 so both TensorCores get work.
    padded_img_bytes = 2 * (8 * hw * 4)                    # in + out, f32, 8-sublane pad
    vmem_cap = max(1, (8 << 20) // (2 * padded_img_bytes))
    target = (n + 1) // 2 if n > 1 else 1
    nb = max(1, min(4, vmem_cap, target))
    while n % nb:
        nb -= 1
    return nb


def conv2d_1to3(x, weight, bias):
    """x: (N, 1, H, W) f32; weight: (3, 1, 3, 3) f32; bias: (3,) f32."""
    N, Cin, H, W = x.shape
    assert Cin == C_IN
    HW = H * W
    NB = _batch_block(N, HW)

    w_flat = weight.astype(jnp.float32).reshape(-1)          # (27,)
    b_flat = bias.astype(jnp.float32)                        # (3,)
    x_flat = x.astype(jnp.float32).reshape(N, C_IN, HW)      # lane-dense, free in XLA

    kernel = functools.partial(_conv3x3_kernel, H=H, W=W)

    out_flat = pl.pallas_call(
        kernel,
        out_shape=jax.ShapeDtypeStruct((N, C_OUT, HW), jnp.float32),
        grid_spec=pltpu.PrefetchScalarGridSpec(
            num_scalar_prefetch=0,
            grid=(N // NB,),
            in_specs=[
                pl.BlockSpec(memory_space=pltpu.MemorySpace.SMEM),  # weights
                pl.BlockSpec(memory_space=pltpu.MemorySpace.SMEM),  # bias
                pl.BlockSpec((NB, C_IN, HW), lambda n: (n, 0, 0)),
            ],
            out_specs=pl.BlockSpec((NB, C_OUT, HW), lambda n: (n, 0, 0)),
        ),
        compiler_params=pltpu.CompilerParams(
            dimension_semantics=("parallel",)),
    )(w_flat, b_flat, x_flat)

    return out_flat.reshape(N, C_OUT, H, W)


def reference_conv(x, weight, bias):
    y = jax.lax.conv_general_dilated(
        x, weight,
        window_strides=(1, 1),
        padding=((PAD, PAD), (PAD, PAD)),
        dimension_numbers=("NCHW", "OIHW", "NCHW"),
    )
    return y + bias.reshape(1, C_OUT, 1, 1)


if __name__ == "__main__":
    key = jax.random.PRNGKey(0)
    k_x, k_w, k_b = jax.random.split(key, 3)

    # Small shapes consistent with the module: batch=2, 1 input channel, 16x16.
    N, H, W = 2, 16, 16
    x = jax.random.normal(k_x, (N, C_IN, H, W), dtype=jnp.float32)

    # PyTorch-style uniform init with bound 1/sqrt(fan_in).
    fan_in = C_IN * KSIZE * KSIZE
    bound = 1.0 / (fan_in ** 0.5)
    weight = jax.random.uniform(k_w, (C_OUT, C_IN, KSIZE, KSIZE),
                                minval=-bound, maxval=bound, dtype=jnp.float32)
    bias = jax.random.uniform(k_b, (C_OUT,),
                              minval=-bound, maxval=bound, dtype=jnp.float32)

    out = jax.block_until_ready(conv2d_1to3(x, weight, bias))
    ref = jax.block_until_ready(reference_conv(x, weight, bias))

    assert out.shape == (N, C_OUT, H, W)
    assert jnp.allclose(out, ref, rtol=1e-5, atol=1e-5), "mismatch vs reference conv"

    print("KERNEL_OK")
</pallas_src>

<mosaic_0001>
module attributes {stable_mosaic.version = 11 : i64} {
  func.func @_conv3x3_kernel(%arg0: i32, %arg1: memref<27xf32, #tpu.memory_space<smem>>, %arg2: memref<3xf32, #tpu.memory_space<smem>>, %arg3: memref<1x1x256xf32, #tpu.memory_space<vmem>>, %arg4: memref<1x3x256xf32, #tpu.memory_space<vmem>>) attributes {dimension_semantics = [#tpu.dimension_semantics<parallel>], iteration_bounds = array<i64: 2>, scalar_prefetch = 0 : i64, scratch_operands = 0 : i64, tpu.core_type = #tpu.core_type<tc>, window_params = [{transform_indices = @transform_0, window_bounds = array<i64: 27>}, {transform_indices = @transform_1, window_bounds = array<i64: 3>}, {transform_indices = @transform_2, window_bounds = array<i64: 1, 1, 256>}, {transform_indices = @transform_3, window_bounds = array<i64: 1, 3, 256>}]} {
    %c0 = arith.constant 0 : index
    %c0_0 = arith.constant 0 : index
    %c0_1 = arith.constant 0 : index
    %0 = vector.load %arg3[%c0, %c0_0, %c0_1] : memref<1x1x256xf32, #tpu.memory_space<vmem>>, vector<1x1x256xf32>
    %1 = vector.shape_cast %0 : vector<1x1x256xf32> to vector<1x256xf32>
    %2 = tpu.iota {dimensions = array<i32: 1>} : vector<1x256xi32>
    %c15_i32 = arith.constant 15 : i32
    %3 = vector.broadcast %c15_i32 : i32 to vector<1x256xi32>
    %4 = arith.andi %2, %3 : vector<1x256xi32>
    %c16_i32 = arith.constant 16 : i32
    %5 = vector.broadcast %c16_i32 : i32 to vector<1x256xi32>
    %6 = arith.cmpi sge, %2, %5 : vector<1x256xi32>
    %c240_i32 = arith.constant 240 : i32
    %7 = vector.broadcast %c240_i32 : i32 to vector<1x256xi32>
    %8 = arith.cmpi slt, %2, %7 : vector<1x256xi32>
    %c1_i32 = arith.constant 1 : i32
    %9 = vector.broadcast %c1_i32 : i32 to vector<1x256xi32>
    %10 = arith.cmpi sge, %4, %9 : vector<1x256xi32>
    %c15_i32_2 = arith.constant 15 : i32
    %11 = vector.broadcast %c15_i32_2 : i32 to vector<1x256xi32>
    %12 = arith.cmpi slt, %4, %11 : vector<1x256xi32>
    %c0_3 = arith.constant 0 : index
    %13 = memref.load %arg2[%c0_3] : memref<3xf32, #tpu.memory_space<smem>>
    %14 = vector.broadcast %13 : f32 to vector<1x256xf32>
    %c1 = arith.constant 1 : index
    %15 = memref.load %arg2[%c1] : memref<3xf32, #tpu.memory_space<smem>>
    %16 = vector.broadcast %15 : f32 to vector<1x256xf32>
    %c2 = arith.constant 2 : index
    %17 = memref.load %arg2[%c2] : memref<3xf32, #tpu.memory_space<smem>>
    %18 = vector.broadcast %17 : f32 to vector<1x256xf32>
    %c17_i32 = arith.constant 17 : i32
    %19 = tpu.dynamic_rotate %1 by %c17_i32 dim 1 : vector<1x256xf32>, i32 -> vector<1x256xf32>
    %20 = arith.andi %6, %10 : vector<1x256xi1>
    %cst = arith.constant 0.000000e+00 : f32
    %21 = vector.broadcast %cst : f32 to vector<1x256xf32>
    %22 = arith.select %20, %19, %21 : vector<1x256xi1>, vector<1x256xf32>
    %c0_4 = arith.constant 0 : index
    %23 = memref.load %arg1[%c0_4] : memref<27xf32, #tpu.memory_space<smem>>
    %24 = vector.broadcast %23 : f32 to vector<1x256xf32>
    %25 = arith.mulf %22, %24 : vector<1x256xf32>
    %26 = arith.addf %14, %25 : vector<1x256xf32>
    %c9 = arith.constant 9 : index
    %27 = memref.load %arg1[%c9] : memref<27xf32, #tpu.memory_space<smem>>
    %28 = vector.broadcast %27 : f32 to vector<1x256xf32>
    %29 = arith.mulf %22, %28 : vector<1x256xf32>
    %30 = arith.addf %16, %29 : vector<1x256xf32>
    %c18 = arith.constant 18 : index
    %31 = memref.load %arg1[%c18] : memref<27xf32, #tpu.memory_space<smem>>
    %32 = vector.broadcast %31 : f32 to vector<1x256xf32>
    %33 = arith.mulf %22, %32 : vector<1x256xf32>
    %34 = arith.addf %18, %33 : vector<1x256xf32>
    %c16_i32_5 = arith.constant 16 : i32
    %35 = tpu.dynamic_rotate %1 by %c16_i32_5 dim 1 : vector<1x256xf32>, i32 -> vector<1x256xf32>
    %cst_6 = arith.constant 0.000000e+00 : f32
    %36 = vector.broadcast %cst_6 : f32 to vector<1x256xf32>
    %37 = arith.select %6, %35, %36 : vector<1x256xi1>, vector<1x256xf32>
    %c1_7 = arith.constant 1 : index
    %38 = memref.load %arg1[%c1_7] : memref<27xf32, #tpu.memory_space<smem>>
    %39 = vector.broadcast %38 : f32 to vector<1x256xf32>
    %40 = arith.mulf %37, %39 : vector<1x256xf32>
    %41 = arith.addf %26, %40 : vector<1x256xf32>
    %c10 = arith.constant 10 : index
    %42 = memref.load %arg1[%c10] : memref<27xf32, #tpu.memory_space<smem>>
    %43 = vector.broadcast %42 : f32 to vector<1x256xf32>
    %44 = arith.mulf %37, %43 : vector<1x256xf32>
    %45 = arith.addf %30, %44 : vector<1x256xf32>
    %c19 = arith.constant 19 : index
    %46 = memref.load %arg1[%c19] : memref<27xf32, #tpu.memory_space<smem>>
    %47 = vector.broadcast %46 : f32 to vector<1x256xf32>
    %48 = arith.mulf %37, %47 : vector<1x256xf32>
    %49 = arith.addf %34, %48 : vector<1x256xf32>
    %c15_i32_8 = arith.constant 15 : i32
    %50 = tpu.dynamic_rotate %1 by %c15_i32_8 dim 1 : vector<1x256xf32>, i32 -> vector<1x256xf32>
    %51 = arith.andi %6, %12 : vector<1x256xi1>
    %cst_9 = arith.constant 0.000000e+00 : f32
    %52 = vector.broadcast %cst_9 : f32 to vector<1x256xf32>
    %53 = arith.select %51, %50, %52 : vector<1x256xi1>, vector<1x256xf32>
    %c2_10 = arith.constant 2 : index
    %54 = memref.load %arg1[%c2_10] : memref<27xf32, #tpu.memory_space<smem>>
    %55 = vector.broadcast %54 : f32 to vector<1x256xf32>
    %56 = arith.mulf %53, %55 : vector<1x256xf32>
    %57 = arith.addf %41, %56 : vector<1x256xf32>
    %c11 = arith.constant 11 : index
    %58 = memref.load %arg1[%c11] : memref<27xf32, #tpu.memory_space<smem>>
    %59 = vector.broadcast %58 : f32 to vector<1x256xf32>
    %60 = arith.mulf %53, %59 : vector<1x256xf32>
    %61 = arith.addf %45, %60 : vector<1x256xf32>
    %c20 = arith.constant 20 : index
    %62 = memref.load %arg1[%c20] : memref<27xf32, #tpu.memory_space<smem>>
    %63 = vector.broadcast %62 : f32 to vector<1x256xf32>
    %64 = arith.mulf %53, %63 : vector<1x256xf32>
    %65 = arith.addf %49, %64 : vector<1x256xf32>
    %c1_i32_11 = arith.constant 1 : i32
    %66 = tpu.dynamic_rotate %1 by %c1_i32_11 dim 1 : vector<1x256xf32>, i32 -> vector<1x256xf32>
    %cst_12 = arith.constant 0.000000e+00 : f32
    %67 = vector.broadcast %cst_12 : f32 to vector<1x256xf32>
    %68 = arith.select %10, %66, %67 : vector<1x256xi1>, vector<1x256xf32>
    %c3 = arith.constant 3 : index
    %69 = memref.load %arg1[%c3] : memref<27xf32, #tpu.memory_space<smem>>
    %70 = vector.broadcast %69 : f32 to vector<1x256xf32>
    %71 = arith.mulf %68, %70 : vector<1x256xf32>
    %72 = arith.addf %57, %71 : vector<1x256xf32>
    %c12 = arith.constant 12 : index
    %73 = memref.load %arg1[%c12] : memref<27xf32, #tpu.memory_space<smem>>
    %74 = vector.broadcast %73 : f32 to vector<1x256xf32>
    %75 = arith.mulf %68, %74 : vector<1x256xf32>
    %76 = arith.addf %61, %75 : vector<1x256xf32>
    %c21 = arith.constant 21 : index
    %77 = memref.load %arg1[%c21] : memref<27xf32, #tpu.memory_space<smem>>
    %78 = vector.broadcast %77 : f32 to vector<1x256xf32>
    %79 = arith.mulf %68, %78 : vector<1x256xf32>
    %80 = arith.addf %65, %79 : vector<1x256xf32>
    %c4 = arith.constant 4 : index
    %81 = memref.load %arg1[%c4] : memref<27xf32, #tpu.memory_space<smem>>
    %82 = vector.broadcast %81 : f32 to vector<1x256xf32>
    %83 = arith.mulf %1, %82 : vector<1x256xf32>
    %84 = arith.addf %72, %83 : vector<1x256xf32>
    %c13 = arith.constant 13 : index
    %85 = memref.load %arg1[%c13] : memref<27xf32, #tpu.memory_space<smem>>
    %86 = vector.broadcast %85 : f32 to vector<1x256xf32>
    %87 = arith.mulf %1, %86 : vector<1x256xf32>
    %88 = arith.addf %76, %87 : vector<1x256xf32>
    %c22 = arith.constant 22 : index
    %89 = memref.load %arg1[%c22] : memref<27xf32, #tpu.memory_space<smem>>
    %90 = vector.broadcast %89 : f32 to vector<1x256xf32>
    %91 = arith.mulf %1, %90 : vector<1x256xf32>
    %92 = arith.addf %80, %91 : vector<1x256xf32>
    %c255_i32 = arith.constant 255 : i32
    %93 = tpu.dynamic_rotate %1 by %c255_i32 dim 1 : vector<1x256xf32>, i32 -> vector<1x256xf32>
    %cst_13 = arith.constant 0.000000e+00 : f32
    %94 = vector.broadcast %cst_13 : f32 to vector<1x256xf32>
    %95 = arith.select %12, %93, %94 : vector<1x256xi1>, vector<1x256xf32>
    %c5 = arith.constant 5 : index
    %96 = memref.load %arg1[%c5] : memref<27xf32, #tpu.memory_space<smem>>
    %97 = vector.broadcast %96 : f32 to vector<1x256xf32>
    %98 = arith.mulf %95, %97 : vector<1x256xf32>
    %99 = arith.addf %84, %98 : vector<1x256xf32>
    %c14 = arith.constant 14 : index
    %100 = memref.load %arg1[%c14] : memref<27xf32, #tpu.memory_space<smem>>
    %101 = vector.broadcast %100 : f32 to vector<1x256xf32>
    %102 = arith.mulf %95, %101 : vector<1x256xf32>
    %103 = arith.addf %88, %102 : vector<1x256xf32>
    %c23 = arith.constant 23 : index
    %104 = memref.load %arg1[%c23] : memref<27xf32, #tpu.memory_space<smem>>
    %105 = vector.broadcast %104 : f32 to vector<1x256xf32>
    %106 = arith.mulf %95, %105 : vector<1x256xf32>
    %107 = arith.addf %92, %106 : vector<1x256xf32>
    %c241_i32 = arith.constant 241 : i32
    %108 = tpu.dynamic_rotate %1 by %c241_i32 dim 1 : vector<1x256xf32>, i32 -> vector<1x256xf32>
    %109 = arith.andi %8, %10 : vector<1x256xi1>
    %cst_14 = arith.constant 0.000000e+00 : f32
    %110 = vector.broadcast %cst_14 : f32 to vector<1x256xf32>
    %111 = arith.select %109, %108, %110 : vector<1x256xi1>, vector<1x256xf32>
    %c6 = arith.constant 6 : index
    %112 = memref.load %arg1[%c6] : memref<27xf32, #tpu.memory_space<smem>>
    %113 = vector.broadcast %112 : f32 to vector<1x256xf32>
    %114 = arith.mulf %111, %113 : vector<1x256xf32>
    %115 = arith.addf %99, %114 : vector<1x256xf32>
    %c15 = arith.constant 15 : index
    %116 = memref.load %arg1[%c15] : memref<27xf32, #tpu.memory_space<smem>>
    %117 = vector.broadcast %116 : f32 to vector<1x256xf32>
    %118 = arith.mulf %111, %117 : vector<1x256xf32>
    %119 = arith.addf %103, %118 : vector<1x256xf32>
    %c24 = arith.constant 24 : index
    %120 = memref.load %arg1[%c24] : memref<27xf32, #tpu.memory_space<smem>>
    %121 = vector.broadcast %120 : f32 to vector<1x256xf32>
    %122 = arith.mulf %111, %121 : vector<1x256xf32>
    %123 = arith.addf %107, %122 : vector<1x256xf32>
    %c240_i32_15 = arith.constant 240 : i32
    %124 = tpu.dynamic_rotate %1 by %c240_i32_15 dim 1 : vector<1x256xf32>, i32 -> vector<1x256xf32>
    %cst_16 = arith.constant 0.000000e+00 : f32
    %125 = vector.broadcast %cst_16 : f32 to vector<1x256xf32>
    %126 = arith.select %8, %124, %125 : vector<1x256xi1>, vector<1x256xf32>
    %c7 = arith.constant 7 : index
    %127 = memref.load %arg1[%c7] : memref<27xf32, #tpu.memory_space<smem>>
    %128 = vector.broadcast %127 : f32 to vector<1x256xf32>
    %129 = arith.mulf %126, %128 : vector<1x256xf32>
    %130 = arith.addf %115, %129 : vector<1x256xf32>
    %c16 = arith.constant 16 : index
    %131 = memref.load %arg1[%c16] : memref<27xf32, #tpu.memory_space<smem>>
    %132 = vector.broadcast %131 : f32 to vector<1x256xf32>
    %133 = arith.mulf %126, %132 : vector<1x256xf32>
    %134 = arith.addf %119, %133 : vector<1x256xf32>
    %c25 = arith.constant 25 : index
    %135 = memref.load %arg1[%c25] : memref<27xf32, #tpu.memory_space<smem>>
    %136 = vector.broadcast %135 : f32 to vector<1x256xf32>
    %137 = arith.mulf %126, %136 : vector<1x256xf32>
    %138 = arith.addf %123, %137 : vector<1x256xf32>
    %c239_i32 = arith.constant 239 : i32
    %139 = tpu.dynamic_rotate %1 by %c239_i32 dim 1 : vector<1x256xf32>, i32 -> vector<1x256xf32>
    %140 = arith.andi %8, %12 : vector<1x256xi1>
    %cst_17 = arith.constant 0.000000e+00 : f32
    %141 = vector.broadcast %cst_17 : f32 to vector<1x256xf32>
    %142 = arith.select %140, %139, %141 : vector<1x256xi1>, vector<1x256xf32>
    %c8 = arith.constant 8 : index
    %143 = memref.load %arg1[%c8] : memref<27xf32, #tpu.memory_space<smem>>
    %144 = vector.broadcast %143 : f32 to vector<1x256xf32>
    %145 = arith.mulf %142, %144 : vector<1x256xf32>
    %146 = arith.addf %130, %145 : vector<1x256xf32>
    %c17 = arith.constant 17 : index
    %147 = memref.load %arg1[%c17] : memref<27xf32, #tpu.memory_space<smem>>
    %148 = vector.broadcast %147 : f32 to vector<1x256xf32>
    %149 = arith.mulf %142, %148 : vector<1x256xf32>
    %150 = arith.addf %134, %149 : vector<1x256xf32>
    %c26 = arith.constant 26 : index
    %151 = memref.load %arg1[%c26] : memref<27xf32, #tpu.memory_space<smem>>
    %152 = vector.broadcast %151 : f32 to vector<1x256xf32>
    %153 = arith.mulf %142, %152 : vector<1x256xf32>
    %154 = arith.addf %138, %153 : vector<1x256xf32>
    %c0_18 = arith.constant 0 : index
    %c0_19 = arith.constant 0 : index
    %c0_20 = arith.constant 0 : index
    %155 = vector.load %arg4[%c0_18, %c0_19, %c0_20] : memref<1x3x256xf32, #tpu.memory_space<vmem>>, vector<1x1x256xf32>
    %156 = vector.shape_cast %155 : vector<1x1x256xf32> to vector<1x256xf32>
    %157 = vector.shape_cast %146 : vector<1x256xf32> to vector<1x1x256xf32>
    tpu.vector_store %arg4[%c0_18, %c0_19, %c0_20], %157 {strides = array<i32>} : memref<1x3x256xf32, #tpu.memory_space<vmem>>, vector<1x1x256xf32>,
    %c0_21 = arith.constant 0 : index
    %c1_22 = arith.constant 1 : index
    %c0_23 = arith.constant 0 : index
    %158 = vector.load %arg4[%c0_21, %c1_22, %c0_23] : memref<1x3x256xf32, #tpu.memory_space<vmem>>, vector<1x1x256xf32>
    %159 = vector.shape_cast %158 : vector<1x1x256xf32> to vector<1x256xf32>
    %160 = vector.shape_cast %150 : vector<1x256xf32> to vector<1x1x256xf32>
    tpu.vector_store %arg4[%c0_21, %c1_22, %c0_23], %160 {strides = array<i32>} : memref<1x3x256xf32, #tpu.memory_space<vmem>>, vector<1x1x256xf32>,
    %c0_24 = arith.constant 0 : index
    %c2_25 = arith.constant 2 : index
    %c0_26 = arith.constant 0 : index
    %161 = vector.load %arg4[%c0_24, %c2_25, %c0_26] : memref<1x3x256xf32, #tpu.memory_space<vmem>>, vector<1x1x256xf32>
    %162 = vector.shape_cast %161 : vector<1x1x256xf32> to vector<1x256xf32>
    %163 = vector.shape_cast %154 : vector<1x256xf32> to vector<1x1x256xf32>
    tpu.vector_store %arg4[%c0_24, %c2_25, %c0_26], %163 {strides = array<i32>} : memref<1x3x256xf32, #tpu.memory_space<vmem>>, vector<1x1x256xf32>,
    return
  }
  func.func @transform_0(%arg0: i32) -> i32 {
    %c0_i32 = arith.constant 0 : i32
    %c0_i32_0 = arith.constant 0 : i32
    return %c0_i32 : i32
  }
  func.func @transform_1(%arg0: i32) -> i32 {
    %c0_i32 = arith.constant 0 : i32
    %c0_i32_0 = arith.constant 0 : i32
    return %c0_i32 : i32
  }
  func.func @transform_2(%arg0: i32) -> (i32, i32, i32) {
    %c0_i32 = arith.constant 0 : i32
    %c0_i32_0 = arith.constant 0 : i32
    %c0_i32_1 = arith.constant 0 : i32
    return %arg0, %c0_i32, %c0_i32_0 : i32, i32, i32
  }
  func.func @transform_3(%arg0: i32) -> (i32, i32, i32) {
    %c0_i32 = arith.constant 0 : i32
    %c0_i32_0 = arith.constant 0 : i32
    %c0_i32_1 = arith.constant 0 : i32
    return %arg0, %c0_i32, %c0_i32_0 : i32, i32, i32
  }
}

</mosaic_0001>

<llo_original>
// kernel: tpu_custom_call.1
$region0: #{tpu_custom_call.1}
  #allocation0 [shape = 'u32[]', space=smem, size = 0x4, offset = 0x4, fixed_abs, tag = 'smem constant byte address 0x4 - core index']
  #allocation1 [shape = 'u32[72,128]{1,0:T(1,128)}', space=vmem, size = 0x9000, scoped, tag = 'internal scratch']
  %s0 = inlined_call_operand.hbm [shape: f32[27], index: 0, kind: input, shape index: {}]
  %s1 = inlined_call_operand.hbm [shape: f32[3], index: 1, kind: input, shape index: {}]
  %s2 = inlined_call_operand.hbm [shape: f32[2,1,256], index: 2, kind: input, shape index: {}]
  %s3 = inlined_call_operand.vmem [shape: f32[2,3,256], index: 3, kind: output, shape index: {}]
  %s4 = sld [smem:[#allocation0]]
  $region57: #{tpu_custom_call.1} parent=0
    _
  %s6 = ssub.s32 1, %s4
  %s7 = scalar_select 0, %s6, %s4
  $region1: #{tpu_custom_call.1} parent=0
    #allocation2 [shape = 'u8[512]{0}', space=smem, size = 0x200, scoped, tag = 'input window, operand 0, single buffered']
    #allocation3 [shape = 's32[2]{0}', space=sflag, size = 0x8, scoped, tag = 'scoped memory for tpu_custom_call.1']
    #allocation4 [shape = 's32[2]{0}', space=sflag, size = 0x8, scoped, tag = 'scoped memory for tpu_custom_call.1']
    #allocation5 [shape = 'u8[512]{0}', space=smem, size = 0x200, scoped, tag = 'input window, operand 1, single buffered']
    #allocation6 [shape = 's32[1]{0}', space=sflag, size = 0x4, scoped, tag = 'scoped memory for tpu_custom_call.1']
    #allocation7 [shape = 'u8[2048]{0}', space=vmem, size = 0x800, scoped, tag = 'input window, operand 2']
    %8 = vsyncpa [#allocation4], 0
    %9 = vsyncpa [#allocation6], 0
    %10 = vsyncpa [#allocation3], 0
    %s11 = scalar_lea.sflag [#allocation3], 1
    %12 = vsyncpa %s11, 0
    loop: start=0, step=1, limit=4
    $region2: #{tpu_custom_call.1} parent=1 // loop_pre_header
      _
    $region3: #{tpu_custom_call.1} parent=1 // loop_header
      %s14 = sphi 0, %s18
      %p15 = scmp.ge.s32.totalorder %s14, 4
      %s22 = sphi 0, %s22
      %s24 = sphi 0, %s22
      %s25 = sphi 0, %s24
      %s39 = sphi 0, %s25
      %s43 = sphi 0, %s43
      %s45 = sphi 0, %s43
      %s46 = sphi 0, %s45
      %s60 = sphi 0, %s46
      %s66 = sphi 0, %s68
      %s69 = sphi 0, %s66
      %s70 = sphi 0, %s69
      %s86 = sphi 0, %s70
      %s92 = sphi 0, %s94
      %s95 = sphi 0, %s92
      %s96 = sphi 0, %s95
      %s112 = sphi 0, %s96
    $region4: #{tpu_custom_call.1} parent=1 // loop_header_branch
      %17 = sbr.rel (%p15) target = $region8
    $region5: #{tpu_custom_call.1} parent=1 // loop_body
      %s19 = ssub.s32 %s14, 1
      %s20 = ssub.s32 %s14, 2
      %s21 = sadd.s32 %s14, 1
      %s23 = sadd.s32 %s22, 1
      %p26 = scmp.eq.s32.totalorder %s14, 1
      %p27 = scmp.ne.s32.totalorder %s22, %s24
      %p28 = scmp.eq.s32.totalorder %s14, 0
      %p29 = por %p27, %p28
      %p30 = scmp.ne.s32.totalorder %s22, %s24
      %p31 = scmp.eq.s32.totalorder %s19, 1
      %p32 = por %p30, %p31
      %p33 = scmp.ne.s32.totalorder %s24, %s25
      %p34 = scmp.eq.s32.totalorder %s19, 0
      %p35 = por %p33, %p34
      %p36 = scmp.ne.s32.totalorder %s24, %s25
      %p37 = scmp.eq.s32.totalorder %s20, 1
      %p38 = por %p36, %p37
      %p40 = scmp.ne.s32.totalorder %s25, %s39
      %p41 = scmp.eq.s32.totalorder %s20, 0
      %p42 = por %p40, %p41
      %s44 = sadd.s32 %s43, 1
      %p47 = scmp.eq.s32.totalorder %s14, 1
      %p48 = scmp.ne.s32.totalorder %s43, %s45
      %p49 = scmp.eq.s32.totalorder %s14, 0
      %p50 = por %p48, %p49
      %p51 = scmp.ne.s32.totalorder %s43, %s45
      %p52 = scmp.eq.s32.totalorder %s19, 1
      %p53 = por %p51, %p52
      %p54 = scmp.ne.s32.totalorder %s45, %s46
      %p55 = scmp.eq.s32.totalorder %s19, 0
      %p56 = por %p54, %p55
      %p57 = scmp.ne.s32.totalorder %s45, %s46
      %p58 = scmp.eq.s32.totalorder %s20, 1
      %p59 = por %p57, %p58
      %p61 = scmp.ne.s32.totalorder %s46, %s60
      %p62 = scmp.eq.s32.totalorder %s20, 0
      %p63 = por %p61, %p62
      %s64 = ssub.s32 %s14, %s21
      %p65 = scmp.eq.s32.totalorder %s64, 0
      %s67 = sadd.s32 %s66, 1
      %s68 = scalar_select %p65, %s66, %s67
      %p71 = pneg %p65
      %p72 = scmp.eq.s32.totalorder %s14, 1
      %p73 = por %p71, %p72
      %p74 = scmp.ne.s32.totalorder %s66, %s69
      %p75 = scmp.eq.s32.totalorder %s14, 0
      %p76 = por %p74, %p75
      %p77 = scmp.ne.s32.totalorder %s66, %s69
      %p78 = scmp.eq.s32.totalorder %s19, 1
      %p79 = por %p77, %p78
      %p80 = scmp.ne.s32.totalorder %s69, %s70
      %p81 = scmp.eq.s32.totalorder %s19, 0
      %p82 = por %p80, %p81
      %p83 = scmp.ne.s32.totalorder %s69, %s70
      %p84 = scmp.eq.s32.totalorder %s20, 1
      %p85 = por %p83, %p84
      %p87 = scmp.ne.s32.totalorder %s70, %s86
      %p88 = scmp.eq.s32.totalorder %s20, 0
      %p89 = por %p87, %p88
      %s90 = ssub.s32 %s14, %s21
      %p91 = scmp.eq.s32.totalorder %s90, 0
      %s93 = sadd.s32 %s92, 1
      %s94 = scalar_select %p91, %s92, %s93
      %p97 = pneg %p91
      %p98 = scmp.eq.s32.totalorder %s14, 1
      %p99 = por %p97, %p98
      %p100 = scmp.ne.s32.totalorder %s92, %s95
      %p101 = scmp.eq.s32.totalorder %s14, 0
      %p102 = por %p100, %p101
      %p103 = scmp.ne.s32.totalorder %s92, %s95
      %p104 = scmp.eq.s32.totalorder %s19, 1
      %p105 = por %p103, %p104
      %p106 = scmp.ne.s32.totalorder %s95, %s96
      %p107 = scmp.eq.s32.totalorder %s19, 0
      %p108 = por %p106, %p107
      %p109 = scmp.ne.s32.totalorder %s95, %s96
      %p110 = scmp.eq.s32.totalorder %s20, 1
      %p111 = por %p109, %p110
      %p113 = scmp.ne.s32.totalorder %s96, %s112
      %p114 = scmp.eq.s32.totalorder %s20, 0
      %p115 = por %p113, %p114
      %p116 = scmp.le.s32.totalorder 1, %s14
      %p117 = scmp.lt.s32.totalorder %s14, 3
      %p118 = pnand %p116, %p117
      %p119 = pneg %p118
      // Predicated region
      $region9: #{tpu_custom_call.1} parent=5 // pred_check
        _
      $region10: #{tpu_custom_call.1} parent=5 // pred_check_branch
        %121 = sbr.rel (%p118) target = $region12
      $region11: #{tpu_custom_call.1} parent=5 // pred_region
        %s122 = ssub.s32 %s14, 1
        // Predicated region
        $region13: #{tpu_custom_call.1} parent=11 // pred_check
          %p123 = pneg %p35
        $region14: #{tpu_custom_call.1} parent=11 // pred_check_branch
          %125 = sbr.rel (%p123) target = $region16
        $region15: #{tpu_custom_call.1} parent=11 // pred_region
          %127 = vsyncadd [#allocation4], 0
          %s129 = sshll.u32 %s0, 4
          %s130 = int_to_ptr.hbm [resolvable:$true] %s129
          %132 = dma.hbm_to_smem %s130, 16, [#allocation2], [#allocation4]
        $region16: #{tpu_custom_call.1} parent=11 // pred_fallthru
          _
        // Predicated region
        $region17: #{tpu_custom_call.1} parent=11 // pred_check
          %p133 = pneg %p56
        $region18: #{tpu_custom_call.1} parent=11 // pred_check_branch
          %135 = sbr.rel (%p133) target = $region20
        $region19: #{tpu_custom_call.1} parent=11 // pred_region
          %137 = vsyncadd [#allocation6], 0
          %s139 = sshll.u32 %s1, 4
          %s140 = int_to_ptr.hbm [resolvable:$true] %s139
          %142 = dma.hbm_to_smem %s140, 16, [#allocation5], [#allocation6]
        $region20: #{tpu_custom_call.1} parent=11 // pred_fallthru
          _
      $region12: #{tpu_custom_call.1} parent=5 // pred_fallthru
        _
      %p143 = scmp.lt.s32.totalorder %s14, 2
      // Predicated region
      $region21: #{tpu_custom_call.1} parent=5 // pred_check
        %p144 = pneg %p143
      $region22: #{tpu_custom_call.1} parent=5 // pred_check_branch
        %146 = sbr.rel (%p144) target = $region24
      $region23: #{tpu_custom_call.1} parent=5 // pred_region
        // Predicated region
        $region25: #{tpu_custom_call.1} parent=23 // pred_check
          %p147 = pneg %p76
        $region26: #{tpu_custom_call.1} parent=23 // pred_check_branch
          %149 = sbr.rel (%p147) target = $region28
        $region27: #{tpu_custom_call.1} parent=23 // pred_region
          %s150 = sand.u32 %s66, 1
          %s151 = scalar_lea.sflag [#allocation3], %s150
          %s152 = sand.u32 %s66, 1
          %s153 = smul.addr %s152, 2
          %s154 = scalar_lea.vmem [#allocation7], %s153
          %156 = vsyncadd %s151, 0
          %s157 = smul.addr %s14, 2
          %s158 = scalar_lea.hbm %s2, %s157
          %s160 = sshll.u32 %s158, 4
          %s161 = int_to_ptr.hbm [resolvable:$true] %s160
          %s162 = sshll.u32 %s154, 4
          %s163 = int_to_ptr.vmem [resolvable:$true] %s162
          %165 = dma.hbm_to_vmem [thread:$0]  %s161, 32, %s163, %s151
        $region28: #{tpu_custom_call.1} parent=23 // pred_fallthru
          _
      $region24: #{tpu_custom_call.1} parent=5 // pred_fallthru
        _
      %p166 = scmp.le.s32.totalorder 1, %s14
      %p167 = scmp.lt.s32.totalorder %s14, 3
      %p168 = pnand %p166, %p167
      %p169 = pneg %p168
      // Predicated region
      $region29: #{tpu_custom_call.1} parent=5 // pred_check
        _
      $region30: #{tpu_custom_call.1} parent=5 // pred_check_branch
        %171 = sbr.rel (%p168) target = $region32
      $region31: #{tpu_custom_call.1} parent=5 // pred_region
        %s172 = ssub.s32 %s14, 1
        // Predicated region
        $region33: #{tpu_custom_call.1} parent=31 // pred_check
          %p173 = pneg %p35
        $region34: #{tpu_custom_call.1} parent=31 // pred_check_branch
          %175 = sbr.rel (%p173) target = $region36
        $region35: #{tpu_custom_call.1} parent=31 // pred_region
          %177 = dma.done [#allocation4], 16
        $region36: #{tpu_custom_call.1} parent=31 // pred_fallthru
          _
        // Predicated region
        $region37: #{tpu_custom_call.1} parent=31 // pred_check
          %p178 = pneg %p56
        $region38: #{tpu_custom_call.1} parent=31 // pred_check_branch
          %180 = sbr.rel (%p178) target = $region40
        $region39: #{tpu_custom_call.1} parent=31 // pred_region
          %182 = dma.done [#allocation6], 16
        $region40: #{tpu_custom_call.1} parent=31 // pred_fallthru
          _
        %s183 = sand.u32 %s69, 1
        %s184 = scalar_lea.sflag [#allocation3], %s183
        %s185 = sand.u32 %s69, 1
        %s186 = smul.addr %s185, 2
        %s187 = scalar_lea.vmem [#allocation7], %s186
        // Predicated region
        $region41: #{tpu_custom_call.1} parent=31 // pred_check
          %p188 = pneg %p82
        $region42: #{tpu_custom_call.1} parent=31 // pred_check_branch
          %190 = sbr.rel (%p188) target = $region44
        $region43: #{tpu_custom_call.1} parent=31 // pred_region
          %192 = dma.done %s184, 32
        $region44: #{tpu_custom_call.1} parent=31 // pred_fallthru
          _
        %193 = sfence
        %p194 = pneg %p35
        %p195 = pneg %p32
        %p196 = pneg %p56
        %p197 = pneg %p53
        %s198 = sand.u32 %s69, 1
        %s199 = scalar_lea.sflag [#allocation3], %s198
        %s200 = sand.u32 %s69, 1
        %s201 = smul.addr %s200, 2
        %s202 = scalar_lea.vmem [#allocation7], %s201
        %p203 = pneg %p82
        %p204 = pneg %p79
        %p205 = pneg %p108
        %p206 = pneg %p105
        %p207 = scmp.lt.s32.totalorder %s19, 1
        %s208 = scalar_select %p207, %s19, 1
        %s209 = smul.addr %s208, 2
        %s210 = smul.addr %s209, 4
        %s211 = scalar_lea.vmem %s3, %s210
        %p212 = scmp.lt.s32.totalorder %s19, 1
        %s213 = scalar_select %p212, %s19, 1
        %s214 = smul.addr %s213, 2
        %s215 = smul.addr %s214, 4
        %s216 = scalar_lea.vmem %s3, %s215
        %v217 = vld [vmem:[%s187] sm:$0x3]
        %v218 = vlaneseq
        %v219 = vand.u32 %v218, 127
        %v220 = vadd.s32 %v219, 128
        %v221 = vand.u32 %v219, 15
        %v222 = vand.u32 %v220, 15
        %vm223 = vcmp.ge.s32.totalorder %v219, 16
        %vm224 = vcmp.ge.s32.totalorder %v220, 16
        %vm225 = vcmp.lt.s32.totalorder %v219, 240
        %vm226 = vcmp.lt.s32.totalorder %v220, 240
        %vm227 = vcmp.ge.s32.totalorder %v221, 1
        %vm228 = vcmp.ge.s32.totalorder %v222, 1
        %vm229 = vcmp.lt.s32.totalorder %v221, 15
        %vm230 = vcmp.lt.s32.totalorder %v222, 15
        %s231 = sld [smem:[#allocation5]]
        %v232 = vstv %s231
        %s233 = sld [smem:[#allocation5 + $0x1]]
        %v234 = vstv %s233
        %s235 = sld [smem:[#allocation5 + $0x2]]
        %v236 = vstv %s235
        %v238 = vperm.slane %v217, 0
        %v239 = vperm.slane %v217, 1
        %242 = vrot.lane.b32.xlu0 %v238, 17
        %v243 = vpop.permute.xlu0 %242
        %244 = vrot.lane.b32.xlu0 %v239, 17
        %v245 = vpop.permute.xlu0 %244
        %vm246 = vcmp.lt.s32.totalorder %v219, 17
        %v247 = vsel %vm246, %v243, %v245
        %v248 = vsel %vm246, %v245, %v243
        %vm249 = vmand %vm223, %vm227
        %vm250 = vmand %vm224, %vm228
        %v251 = vsel %vm249, %v248, 0.0
        %v252 = vsel %vm250, %v247, 0.0
        %s253 = sld [smem:[#allocation2]]
        %v254 = vstv %s253
        %v255 = vmul.f32 %v251, %v254
        %v256 = vmul.f32 %v252, %v254
        %v257 = vadd.f32 %v232, %v255
        %v258 = vadd.f32 %v232, %v256
        %s259 = sld [smem:[#allocation2 + $0x9]]
        %v260 = vstv %s259
        %v261 = vmul.f32 %v251, %v260
        %v262 = vmul.f32 %v252, %v260
        %v263 = vadd.f32 %v234, %v261
        %v264 = vadd.f32 %v234, %v262
        %s265 = sld [smem:[#allocation2 + $0x12]]
        %v266 = vstv %s265
        %v267 = vmul.f32 %v251, %v266
        %v268 = vmul.f32 %v252, %v266
        %v269 = vadd.f32 %v236, %v267
        %v270 = vadd.f32 %v236, %v268
        %271 = vrot.lane.b32.xlu0 %v238, 16
        %v272 = vpop.permute.xlu0 %271
        %273 = vrot.lane.b32.xlu0 %v239, 16
        %v274 = vpop.permute.xlu0 %273
        %vm275 = vcmp.lt.s32.totalorder %v219, 16
        %v276 = vsel %vm275, %v272, %v274
        %v277 = vsel %vm275, %v274, %v272
        %v278 = vsel %vm223, %v277, 0.0
        %v279 = vsel %vm224, %v276, 0.0
        %s280 = sld [smem:[#allocation2 + $0x1]]
        %v281 = vstv %s280
        %v282 = vmul.f32 %v278, %v281
        %v283 = vmul.f32 %v279, %v281
        %v284 = vadd.f32 %v257, %v282
        %v285 = vadd.f32 %v258, %v283
        %s286 = sld [smem:[#allocation2 + $0xa]]
        %v287 = vstv %s286
        %v288 = vmul.f32 %v278, %v287
        %v289 = vmul.f32 %v279, %v287
        %v290 = vadd.f32 %v263, %v288
        %v291 = vadd.f32 %v264, %v289
        %s292 = sld [smem:[#allocation2 + $0x13]]
        %v293 = vstv %s292
        %v294 = vmul.f32 %v278, %v293
        %v295 = vmul.f32 %v279, %v293
        %v296 = vadd.f32 %v269, %v294
        %v297 = vadd.f32 %v270, %v295
        %298 = vrot.lane.b32.xlu0 %v238, 15
        %v299 = vpop.permute.xlu0 %298
        %300 = vrot.lane.b32.xlu0 %v239, 15
        %v301 = vpop.permute.xlu0 %300
        %vm302 = vcmp.lt.s32.totalorder %v219, 15
        %v303 = vsel %vm302, %v299, %v301
        %v304 = vsel %vm302, %v301, %v299
        %vm305 = vmand %vm223, %vm229
        %vm306 = vmand %vm224, %vm230
        %v307 = vsel %vm305, %v304, 0.0
        %v308 = vsel %vm306, %v303, 0.0
        %s309 = sld [smem:[#allocation2 + $0x2]]
        %v310 = vstv %s309
        %v311 = vmul.f32 %v307, %v310
        %v312 = vmul.f32 %v308, %v310
        %v313 = vadd.f32 %v284, %v311
        %v314 = vadd.f32 %v285, %v312
        %s315 = sld [smem:[#allocation2 + $0xb]]
        %v316 = vstv %s315
        %v317 = vmul.f32 %v307, %v316
        %v318 = vmul.f32 %v308, %v316
        %v319 = vadd.f32 %v290, %v317
        %v320 = vadd.f32 %v291, %v318
        %s321 = sld [smem:[#allocation2 + $0x14]]
        %v322 = vstv %s321
        %v323 = vmul.f32 %v307, %v322
        %v324 = vmul.f32 %v308, %v322
        %v325 = vadd.f32 %v296, %v323
        %v326 = vadd.f32 %v297, %v324
        %327 = vrot.lane.b32.xlu0 %v238, 1
        %v328 = vpop.permute.xlu0 %327
        %329 = vrot.lane.b32.xlu0 %v239, 1
        %v330 = vpop.permute.xlu0 %329
        %vm331 = vcmp.lt.s32.totalorder %v219, 1
        %v332 = vsel %vm331, %v328, %v330
        %v333 = vsel %vm331, %v330, %v328
        %v334 = vsel %vm227, %v333, 0.0
        %v335 = vsel %vm228, %v332, 0.0
        %s336 = sld [smem:[#allocation2 + $0x3]]
        %v337 = vstv %s336
        %v338 = vmul.f32 %v334, %v337
        %v339 = vmul.f32 %v335, %v337
        %v340 = vadd.f32 %v313, %v338
        %v341 = vadd.f32 %v314, %v339
        %s342 = sld [smem:[#allocation2 + $0xc]]
        %v343 = vstv %s342
        %v344 = vmul.f32 %v334, %v343
        %v345 = vmul.f32 %v335, %v343
        %v346 = vadd.f32 %v319, %v344
        %v347 = vadd.f32 %v320, %v345
        %s348 = sld [smem:[#allocation2 + $0x15]]
        %v349 = vstv %s348
        %v350 = vmul.f32 %v334, %v349
        %v351 = vmul.f32 %v335, %v349
        %v352 = vadd.f32 %v325, %v350
        %v353 = vadd.f32 %v326, %v351
        %s354 = sld [smem:[#allocation2 + $0x4]]
        %v355 = vstv %s354
        %v356 = vmul.f32 %v217, %v355
        %v358 = vperm.slane %v356, 0
        %v359 = vperm.slane %v356, 1
        %v362 = vadd.f32 %v340, %v358
        %v363 = vadd.f32 %v341, %v359
        %s364 = sld [smem:[#allocation2 + $0xd]]
        %v365 = vstv %s364
        %v366 = vmul.f32 %v217, %v365
        %v368 = vperm.slane %v366, 0
        %v369 = vperm.slane %v366, 1
        %v372 = vadd.f32 %v346, %v368
        %v373 = vadd.f32 %v347, %v369
        %s374 = sld [smem:[#allocation2 + $0x16]]
        %v375 = vstv %s374
        %v376 = vmul.f32 %v217, %v375
        %v378 = vperm.slane %v376, 0
        %v379 = vperm.slane %v376, 1
        %v382 = vadd.f32 %v352, %v378
        %v383 = vadd.f32 %v353, %v379
        %384 = vrot.lane.b32.xlu0 %v238, 127
        %v385 = vpop.permute.xlu0 %384
        %386 = vrot.lane.b32.xlu0 %v239, 127
        %v387 = vpop.permute.xlu0 %386
        %vm388 = vcmp.lt.s32.totalorder %v219, 127
        %v389 = vsel %vm388, %v385, %v387
        %v390 = vsel %vm388, %v387, %v385
        %v391 = vsel %vm229, %v389, 0.0
        %v392 = vsel %vm230, %v390, 0.0
        %s393 = sld [smem:[#allocation2 + $0x5]]
        %v394 = vstv %s393
        %v395 = vmul.f32 %v391, %v394
        %v396 = vmul.f32 %v392, %v394
        %v397 = vadd.f32 %v362, %v395
        %v398 = vadd.f32 %v363, %v396
        %s399 = sld [smem:[#allocation2 + $0xe]]
        %v400 = vstv %s399
        %v401 = vmul.f32 %v391, %v400
        %v402 = vmul.f32 %v392, %v400
        %v403 = vadd.f32 %v372, %v401
        %v404 = vadd.f32 %v373, %v402
        %s405 = sld [smem:[#allocation2 + $0x17]]
        %v406 = vstv %s405
        %v407 = vmul.f32 %v391, %v406
        %v408 = vmul.f32 %v392, %v406
        %v409 = vadd.f32 %v382, %v407
        %v410 = vadd.f32 %v383, %v408
        %411 = vrot.lane.b32.xlu0 %v238, 113
        %v412 = vpop.permute.xlu0 %411
        %413 = vrot.lane.b32.xlu0 %v239, 113
        %v414 = vpop.permute.xlu0 %413
        %vm415 = vcmp.lt.s32.totalorder %v219, 113
        %v416 = vsel %vm415, %v412, %v414
        %v417 = vsel %vm415, %v414, %v412
        %vm418 = vmand %vm225, %vm227
        %vm419 = vmand %vm226, %vm228
        %v420 = vsel %vm418, %v416, 0.0
        %v421 = vsel %vm419, %v417, 0.0
        %s422 = sld [smem:[#allocation2 + $0x6]]
        %v423 = vstv %s422
        %v424 = vmul.f32 %v420, %v423
        %v425 = vmul.f32 %v421, %v423
        %v426 = vadd.f32 %v397, %v424
        %v427 = vadd.f32 %v398, %v425
        %s428 = sld [smem:[#allocation2 + $0xf]]
        %v429 = vstv %s428
        %v430 = vmul.f32 %v420, %v429
        %v431 = vmul.f32 %v421, %v429
        %v432 = vadd.f32 %v403, %v430
        %v433 = vadd.f32 %v404, %v431
        %s434 = sld [smem:[#allocation2 + $0x18]]
        %v435 = vstv %s434
        %v436 = vmul.f32 %v420, %v435
        %v437 = vmul.f32 %v421, %v435
        %v438 = vadd.f32 %v409, %v436
        %v439 = vadd.f32 %v410, %v437
        %440 = vrot.lane.b32.xlu0 %v238, 112
        %v441 = vpop.permute.xlu0 %440
        %442 = vrot.lane.b32.xlu0 %v239, 112
        %v443 = vpop.permute.xlu0 %442
        %vm444 = vcmp.lt.s32.totalorder %v219, 112
        %v445 = vsel %vm444, %v441, %v443
        %v446 = vsel %vm444, %v443, %v441
        %v447 = vsel %vm225, %v445, 0.0
        %v448 = vsel %vm226, %v446, 0.0
        %s449 = sld [smem:[#allocation2 + $0x7]]
        %v450 = vstv %s449
        %v451 = vmul.f32 %v447, %v450
        %v452 = vmul.f32 %v448, %v450
        %v453 = vadd.f32 %v426, %v451
        %v454 = vadd.f32 %v427, %v452
        %s455 = sld [smem:[#allocation2 + $0x10]]
        %v456 = vstv %s455
        %v457 = vmul.f32 %v447, %v456
        %v458 = vmul.f32 %v448, %v456
        %v459 = vadd.f32 %v432, %v457
        %v460 = vadd.f32 %v433, %v458
        %s461 = sld [smem:[#allocation2 + $0x19]]
        %v462 = vstv %s461
        %v463 = vmul.f32 %v447, %v462
        %v464 = vmul.f32 %v448, %v462
        %v465 = vadd.f32 %v438, %v463
        %v466 = vadd.f32 %v439, %v464
        %467 = vrot.lane.b32.xlu0 %v238, 111
        %v468 = vpop.permute.xlu0 %467
        %469 = vrot.lane.b32.xlu0 %v239, 111
        %v470 = vpop.permute.xlu0 %469
        %vm471 = vcmp.lt.s32.totalorder %v219, 111
        %v472 = vsel %vm471, %v468, %v470
        %v473 = vsel %vm471, %v470, %v468
        %vm474 = vmand %vm225, %vm229
        %vm475 = vmand %vm226, %vm230
        %v476 = vsel %vm474, %v472, 0.0
        %v477 = vsel %vm475, %v473, 0.0
        %s478 = sld [smem:[#allocation2 + $0x8]]
        %v479 = vstv %s478
        %v480 = vmul.f32 %v476, %v479
        %v481 = vmul.f32 %v477, %v479
        %v482 = vadd.f32 %v453, %v480
        %v483 = vadd.f32 %v454, %v481
        %s484 = sld [smem:[#allocation2 + $0x11]]
        %v485 = vstv %s484
        %v486 = vmul.f32 %v476, %v485
        %v487 = vmul.f32 %v477, %v485
        %v488 = vadd.f32 %v459, %v486
        %v489 = vadd.f32 %v460, %v487
        %s490 = sld [smem:[#allocation2 + $0x1a]]
        %v491 = vstv %s490
        %v492 = vmul.f32 %v476, %v491
        %v493 = vmul.f32 %v477, %v491
        %v494 = vadd.f32 %v465, %v492
        %v495 = vadd.f32 %v466, %v493
        %v498 = vrot.slane %v483, 7
        %vm499 = vcmask 1040384
        %v500 = vsel %vm499, %v482, %v498
        %v502 = vlaneseq
        %vm503 = vcmp.ge.s32.totalorder %v502, 0
        %vm504 = vcmp.lt.s32.totalorder %v502, 256
        %vm505 = vmand %vm503, %vm504
        %506 = vst.msk [vmem:[%s216] ss:$4 sm:$0x3] %vm505, %v500
        %v509 = vrot.slane %v489, 7
        %v510 = vsel %vm499, %v488, %v509
        %s512 = scalar_lea.vmem %s216, 1
        %513 = vst.msk [vmem:[%s512] ss:$4 sm:$0x3] %vm505, %v510
        %v516 = vrot.slane %v495, 7
        %v517 = vsel %vm499, %v494, %v516
        %s519 = scalar_lea.vmem %s216, 2
        %520 = vst.msk [vmem:[%s519] ss:$4 sm:$0x3] %vm505, %v517
        %p521 = scmp.lt.s32.totalorder %s19, 1
        %s522 = scalar_select %p521, %s19, 1
        %s523 = smul.addr %s522, 2
        %s524 = smul.addr %s523, 4
        %s525 = scalar_lea.vmem %s3, %s524
        // Predicated region
        $region45: #{tpu_custom_call.1} parent=31 // pred_check
          %p526 = pneg %p105
        $region46: #{tpu_custom_call.1} parent=31 // pred_check_branch
          %528 = sbr.rel (%p526) target = $region48
        $region47: #{tpu_custom_call.1} parent=31 // pred_region
          _
        $region48: #{tpu_custom_call.1} parent=31 // pred_fallthru
          _
      $region32: #{tpu_custom_call.1} parent=5 // pred_fallthru
        _
      %p529 = scmp.le.s32.totalorder 2, %s14
      // Predicated region
      $region49: #{tpu_custom_call.1} parent=5 // pred_check
        %p530 = pneg %p529
      $region50: #{tpu_custom_call.1} parent=5 // pred_check_branch
        %532 = sbr.rel (%p530) target = $region52
      $region51: #{tpu_custom_call.1} parent=5 // pred_region
        %s533 = ssub.s32 %s14, 2
        // Predicated region
        $region53: #{tpu_custom_call.1} parent=51 // pred_check
          %p534 = pneg %p111
        $region54: #{tpu_custom_call.1} parent=51 // pred_check_branch
          %536 = sbr.rel (%p534) target = $region56
        $region55: #{tpu_custom_call.1} parent=51 // pred_region
          %p537 = scmp.lt.s32.totalorder %s20, 1
          %s538 = scalar_select %p537, %s20, 1
          %s539 = smul.addr %s538, 2
          %s540 = smul.addr %s539, 4
          %s541 = scalar_lea.vmem %s3, %s540
        $region56: #{tpu_custom_call.1} parent=51 // pred_fallthru
          _
      $region52: #{tpu_custom_call.1} parent=5 // pred_fallthru
        _
    $region6: #{tpu_custom_call.1} parent=1 // loop_footer
      %s18 = sadd.s32 1, %s14
    $region7: #{tpu_custom_call.1} parent=1 // loop_footer_branch
      %13 = sbr.rel target = $region3
    $region8: #{tpu_custom_call.1} parent=1 // loop_exit
      _
    %542 = vsyncpa [#allocation3], 1
    %s543 = scalar_lea.sflag [#allocation3], 1
    %544 = vsyncpa %s543, 1
    %545 = vsyncpa [#allocation4], 1
    %s546 = scalar_lea.sflag [#allocation4], 1
    %547 = vsyncpa %s546, 1
    %548 = vsyncpa [#allocation6], 1

</llo_original>
